<compile_context>
chip_gen: v6e
topology: v6e:2x2x1
jax: 0.10.0
libtpu: 0.0.40
codegen_flags: <defaults>
</compile_context>

<pallas_src>
import functools

import jax
import jax.numpy as jnp
from jax import lax
from jax.experimental import pallas as pl
from jax.experimental.pallas import tpu as pltpu


_LANE = 128
_SUBLANE = 8
# Column-tile cap: keeps tb >= 256 at the 1M-element budget so partial-sum
# writeback is a tiny fraction of input traffic.
_MAX_TC = 4096


def _round_up(v, m):
    return (v + m - 1) // m * m


def _cdiv(a, b):
    return (a + b - 1) // b


def _vmem_config():
    """Return (tile_elems, vmem_limit_bytes).

    2M-element (8 MiB/input) tiles with a 64 MiB scoped limit on chips with
    128 MiB VMEM (v5e/v6e); conservative 1M / 32 MiB otherwise (safe on v7x's
    64 MiB per-TC VMEM).
    """
    try:
        vmem = pltpu.get_tpu_info().vmem_capacity_bytes
        if vmem >= 128 * 1024 * 1024:
            return 2 << 20, 64 * 1024 * 1024
    except Exception:
        pass
    return 1 << 20, 32 * 1024 * 1024


def _bce_kernel(x_ref, t_ref, o_ref, *, n, c, tb, tc, mask_rows, mask_cols):
    # Upcast so bf16 inputs are supported; math stays in f32.
    x = x_ref[...].astype(jnp.float32)
    t = t_ref[...].astype(jnp.float32)
    # Elementwise BCE term (VPU muls/adds + EUP logs). Two logs keep exact
    # module semantics for soft (non-binary) targets.
    term = (t * jnp.log(jnp.maximum(x, 1e-10))
            + (1.0 - t) * jnp.log(jnp.maximum(1.0 - x, 1e-10)))
    # Ragged edges: out-of-bounds lanes/rows of the block hold unspecified
    # data, so zero the whole term there. Static flags -> no cost for
    # tile-divisible shapes.
    if mask_rows or mask_cols:
        valid = None
        if mask_rows:
            row = (pl.program_id(0) * tb
                   + lax.broadcasted_iota(jnp.int32, (tb, tc), 0))
            valid = row < n
        if mask_cols:
            col = (pl.program_id(1) * tc
                   + lax.broadcasted_iota(jnp.int32, (tb, tc), 1))
            cval = col < c
            valid = cval if valid is None else (valid & cval)
        term = jnp.where(valid, term, 0.0)
    # Partial reduce to a lane-dense (8, tc) slab: vreg-aligned VPU adds only
    # (no cross-lane XLU reduce, no serialized scalar accumulator).
    o_ref[...] = jnp.sum(term.reshape(tb // _SUBLANE, _SUBLANE, tc), axis=0)


def bce_loss(x, t):
    assert x.shape == t.shape and x.ndim == 2
    n, c = x.shape
    tile_elems, vmem_limit = _vmem_config()

    # --- Column tiling: balanced blocks, no rounding C up to a tile multiple.
    cl = _round_up(c, _LANE)
    if cl <= _MAX_TC:
        tc = cl
    else:
        ncb0 = _cdiv(cl, _MAX_TC)
        tc = _round_up(_cdiv(c, ncb0), _LANE)
    ncb = _cdiv(c, tc)

    # --- Row tiling: fill the per-tile element budget (no artificial row cap).
    tb = max(_SUBLANE, (tile_elems // tc) // _SUBLANE * _SUBLANE)
    tb = min(tb, _round_up(n, _SUBLANE))
    nrb = _cdiv(n, tb)

    # v7x megacore: guarantee >= 2 blocks along a "parallel" axis when there
    # is enough work, so both TensorCores get a share. No effect on v5e/v6e.
    if nrb * ncb == 1 and n > _SUBLANE:
        tb = _round_up(_cdiv(n, 2), _SUBLANE)
        nrb = _cdiv(n, tb)

    mask_rows = (n % tb) != 0
    mask_cols = (c % tc) != 0

    kernel = functools.partial(_bce_kernel, n=n, c=c, tb=tb, tc=tc,
                               mask_rows=mask_rows, mask_cols=mask_cols)

    partials = pl.pallas_call(
        kernel,
        out_shape=jax.ShapeDtypeStruct((nrb * _SUBLANE, ncb * tc), jnp.float32),
        grid_spec=pltpu.PrefetchScalarGridSpec(
            num_scalar_prefetch=0,
            grid=(nrb, ncb),
            in_specs=[
                pl.BlockSpec((tb, tc), lambda i, j: (i, j)),
                pl.BlockSpec((tb, tc), lambda i, j: (i, j)),
            ],
            out_specs=pl.BlockSpec((_SUBLANE, tc), lambda i, j: (i, j)),
        ),
        compiler_params=pltpu.CompilerParams(
            dimension_semantics=("parallel", "parallel"),
            vmem_limit_bytes=vmem_limit,
        ),
    )(x, t)

    # Tiny final reduction + mean over the original batch size, then negate.
    return -jnp.sum(partials) / jnp.float32(n)


def bce_loss_ref(x, t):
    term = (t * jnp.log(jnp.maximum(x, 1e-10))
            + (1.0 - t) * jnp.log(jnp.maximum(1.0 - x, 1e-10)))
    return -jnp.mean(jnp.sum(term, axis=1))


if __name__ == "__main__":
    key = jax.random.PRNGKey(0)
    k1, k2 = jax.random.split(key)

    N, C = 64, 128  # small (batch, classes)
    # Predictions in (0, 1), targets in {0, 1}.
    x = jax.nn.sigmoid(jax.random.normal(k1, (N, C), dtype=jnp.float32))
    t = jax.random.bernoulli(k2, p=0.3, shape=(N, C)).astype(jnp.float32)

    loss = bce_loss(x, t)
    jax.block_until_ready(loss)

    ref = bce_loss_ref(x, t)
    assert jnp.allclose(loss, ref, rtol=1e-5, atol=1e-5), (loss, ref)

    print("KERNEL_OK")
</pallas_src>

<mosaic_0001>
module attributes {stable_mosaic.version = 11 : i64} {
  func.func @_bce_kernel(%arg0: i32, %arg1: i32, %arg2: memref<32x128xf32, #tpu.memory_space<vmem>>, %arg3: memref<32x128xf32, #tpu.memory_space<vmem>>, %arg4: memref<8x128xf32, #tpu.memory_space<vmem>>) attributes {dimension_semantics = [#tpu.dimension_semantics<parallel>, #tpu.dimension_semantics<parallel>], iteration_bounds = array<i64: 2, 1>, scalar_prefetch = 0 : i64, scratch_operands = 0 : i64, tpu.core_type = #tpu.core_type<tc>, window_params = [{transform_indices = @transform_0, window_bounds = array<i64: 32, 128>}, {transform_indices = @transform_1, window_bounds = array<i64: 32, 128>}, {transform_indices = @transform_2, window_bounds = array<i64: 8, 128>}]} {
    %c0 = arith.constant 0 : index
    %c0_0 = arith.constant 0 : index
    %0 = vector.load %arg2[%c0, %c0_0] : memref<32x128xf32, #tpu.memory_space<vmem>>, vector<32x128xf32>
    %c0_1 = arith.constant 0 : index
    %c0_2 = arith.constant 0 : index
    %1 = vector.load %arg3[%c0_1, %c0_2] : memref<32x128xf32, #tpu.memory_space<vmem>>, vector<32x128xf32>
    %cst = arith.constant 1.000000e-10 : f32
    %2 = vector.broadcast %cst : f32 to vector<32x128xf32>
    %3 = arith.maximumf %0, %2 : vector<32x128xf32>
    %4 = math.log %3 : vector<32x128xf32>
    %5 = arith.mulf %1, %4 : vector<32x128xf32>
    %cst_3 = arith.constant 1.000000e+00 : f32
    %6 = vector.broadcast %cst_3 : f32 to vector<32x128xf32>
    %7 = arith.subf %6, %1 : vector<32x128xf32>
    %cst_4 = arith.constant 1.000000e+00 : f32
    %8 = vector.broadcast %cst_4 : f32 to vector<32x128xf32>
    %9 = arith.subf %8, %0 : vector<32x128xf32>
    %cst_5 = arith.constant 1.000000e-10 : f32
    %10 = vector.broadcast %cst_5 : f32 to vector<32x128xf32>
    %11 = arith.maximumf %9, %10 : vector<32x128xf32>
    %12 = math.log %11 : vector<32x128xf32>
    %13 = arith.mulf %7, %12 : vector<32x128xf32>
    %14 = arith.addf %5, %13 : vector<32x128xf32>
    %15 = vector.shape_cast %14 : vector<32x128xf32> to vector<4x8x128xf32>
    %cst_6 = arith.constant dense<0.000000e+00> : vector<8x128xf32>
    %16 = vector.multi_reduction <add>, %15, %cst_6 [0] : vector<4x8x128xf32> to vector<8x128xf32>
    %c0_7 = arith.constant 0 : index
    %c0_8 = arith.constant 0 : index
    %17 = vector.load %arg4[%c0_7, %c0_8] : memref<8x128xf32, #tpu.memory_space<vmem>>, vector<8x128xf32>
    tpu.vector_store %arg4[%c0_7, %c0_8], %16 {strides = array<i32>} : memref<8x128xf32, #tpu.memory_space<vmem>>, vector<8x128xf32>,
    return
  }
  func.func @transform_0(%arg0: i32, %arg1: i32) -> (i32, i32) {
    %c0_i32 = arith.constant 0 : i32
    return %arg0, %arg1 : i32, i32
  }
  func.func @transform_1(%arg0: i32, %arg1: i32) -> (i32, i32) {
    %c0_i32 = arith.constant 0 : i32
    return %arg0, %arg1 : i32, i32
  }
  func.func @transform_2(%arg0: i32, %arg1: i32) -> (i32, i32) {
    %c0_i32 = arith.constant 0 : i32
    return %arg0, %arg1 : i32, i32
  }
}

</mosaic_0001>

<llo_original>
// kernel: tpu_custom_call.1
$region0: #{tpu_custom_call.1}
  #allocation0 [shape = 'u32[]', space=smem, size = 0x4, offset = 0x4, fixed_abs, tag = 'smem constant byte address 0x4 - core index']
  #allocation1 [shape = 'u32[144,128]{1,0:T(1,128)}', space=vmem, size = 0x12000, scoped, tag = 'internal scratch']
  %s0 = inlined_call_operand.hbm [shape: f32[64,128], index: 0, kind: input, shape index: {}]
  %s1 = inlined_call_operand.hbm [shape: f32[64,128], index: 1, kind: input, shape index: {}]
  %s2 = inlined_call_operand.hbm [shape: f32[16,128], index: 2, kind: output, shape index: {}]
  %s3 = sld [smem:[#allocation0]]
  $region49: #{tpu_custom_call.1} parent=0
    _
  %s5 = ssub.s32 1, %s3
  %s6 = scalar_select 0, %s5, %s3
  $region1: #{tpu_custom_call.1} parent=0
    #allocation2 [shape = 'u8[32768]{0}', space=vmem, size = 0x8000, scoped, tag = 'input window, operand 0']
    #allocation3 [shape = 's32[2]{0}', space=sflag, size = 0x8, scoped, tag = 'scoped memory for tpu_custom_call.1']
    #allocation4 [shape = 's32[2]{0}', space=sflag, size = 0x8, scoped, tag = 'scoped memory for tpu_custom_call.1']
    #allocation5 [shape = 'u8[32768]{0}', space=vmem, size = 0x8000, scoped, tag = 'input window, operand 1']
    #allocation6 [shape = 's32[2]{0}', space=sflag, size = 0x8, scoped, tag = 'scoped memory for tpu_custom_call.1']
    #allocation7 [shape = 'u8[8192]{0}', space=vmem, size = 0x2000, scoped, tag = 'output window, operand 0']
    %7 = vsyncpa [#allocation3], 0
    %s8 = scalar_lea.sflag [#allocation3], 1
    %9 = vsyncpa %s8, 0
    %10 = vsyncpa [#allocation6], 0
    %s11 = scalar_lea.sflag [#allocation6], 1
    %12 = vsyncpa %s11, 0
    %13 = vsyncpa [#allocation4], 0
    %s14 = scalar_lea.sflag [#allocation4], 1
    %15 = vsyncpa %s14, 0
    loop: start=0, step=1, limit=4
    $region2: #{tpu_custom_call.1} parent=1 // loop_pre_header
      _
    $region3: #{tpu_custom_call.1} parent=1 // loop_header
      %s17 = sphi 0, %s21
      %p18 = scmp.ge.s32.totalorder %s17, 4
      %s24 = sphi 0, %s36
      %s25 = sphi 0, %s32
      %s26 = sphi 0, %s24
      %s27 = sphi 0, %s25
      %s28 = sphi 0, %s26
      %s29 = sphi 0, %s27
      %s41 = sphi 0, %s43
      %s44 = sphi 0, %s41
      %s45 = sphi 0, %s44
      %s61 = sphi 0, %s45
      %s69 = sphi 0, %s71
      %s72 = sphi 0, %s69
      %s73 = sphi 0, %s72
      %s89 = sphi 0, %s73
      %s97 = sphi 0, %s99
      %s100 = sphi 0, %s97
      %s101 = sphi 0, %s100
      %s117 = sphi 0, %s101
    $region4: #{tpu_custom_call.1} parent=1 // loop_header_branch
      %20 = sbr.rel (%p18) target = $region8
    $region5: #{tpu_custom_call.1} parent=1 // loop_body
      %s22 = ssub.s32 %s17, 1
      %s23 = ssub.s32 %s17, 2
      %s30 = sadd.s32 1, %s25
      %p31 = scmp.ge.s32.totalorder %s30, 1
      %s32 = scalar_select %p31, 0, %s30
      %s33 = sadd.s32 1, %s24
      %s34 = scalar_select %p31, %s33, %s24
      %p35 = scmp.ge.s32.totalorder %s34, 2
      %s36 = scalar_select %p35, 0, %s34
      %s37 = ssub.s32 %s24, %s36
      %s38 = ssub.s32 %s25, %s32
      %s39 = sor.u32 %s37, %s38
      %p40 = scmp.eq.s32.totalorder %s39, 0
      %s42 = sadd.s32 %s41, 1
      %s43 = scalar_select %p40, %s41, %s42
      %p46 = pneg %p40
      %p47 = scmp.eq.s32.totalorder %s17, 1
      %p48 = por %p46, %p47
      %p49 = scmp.ne.s32.totalorder %s41, %s44
      %p50 = scmp.eq.s32.totalorder %s17, 0
      %p51 = por %p49, %p50
      %p52 = scmp.ne.s32.totalorder %s41, %s44
      %p53 = scmp.eq.s32.totalorder %s22, 1
      %p54 = por %p52, %p53
      %p55 = scmp.ne.s32.totalorder %s44, %s45
      %p56 = scmp.eq.s32.totalorder %s22, 0
      %p57 = por %p55, %p56
      %p58 = scmp.ne.s32.totalorder %s44, %s45
      %p59 = scmp.eq.s32.totalorder %s23, 1
      %p60 = por %p58, %p59
      %p62 = scmp.ne.s32.totalorder %s45, %s61
      %p63 = scmp.eq.s32.totalorder %s23, 0
      %p64 = por %p62, %p63
      %s65 = ssub.s32 %s24, %s36
      %s66 = ssub.s32 %s25, %s32
      %s67 = sor.u32 %s65, %s66
      %p68 = scmp.eq.s32.totalorder %s67, 0
      %s70 = sadd.s32 %s69, 1
      %s71 = scalar_select %p68, %s69, %s70
      %p74 = pneg %p68
      %p75 = scmp.eq.s32.totalorder %s17, 1
      %p76 = por %p74, %p75
      %p77 = scmp.ne.s32.totalorder %s69, %s72
      %p78 = scmp.eq.s32.totalorder %s17, 0
      %p79 = por %p77, %p78
      %p80 = scmp.ne.s32.totalorder %s69, %s72
      %p81 = scmp.eq.s32.totalorder %s22, 1
      %p82 = por %p80, %p81
      %p83 = scmp.ne.s32.totalorder %s72, %s73
      %p84 = scmp.eq.s32.totalorder %s22, 0
      %p85 = por %p83, %p84
      %p86 = scmp.ne.s32.totalorder %s72, %s73
      %p87 = scmp.eq.s32.totalorder %s23, 1
      %p88 = por %p86, %p87
      %p90 = scmp.ne.s32.totalorder %s73, %s89
      %p91 = scmp.eq.s32.totalorder %s23, 0
      %p92 = por %p90, %p91
      %s93 = ssub.s32 %s24, %s36
      %s94 = ssub.s32 %s25, %s32
      %s95 = sor.u32 %s93, %s94
      %p96 = scmp.eq.s32.totalorder %s95, 0
      %s98 = sadd.s32 %s97, 1
      %s99 = scalar_select %p96, %s97, %s98
      %p102 = pneg %p96
      %p103 = scmp.eq.s32.totalorder %s17, 1
      %p104 = por %p102, %p103
      %p105 = scmp.ne.s32.totalorder %s97, %s100
      %p106 = scmp.eq.s32.totalorder %s17, 0
      %p107 = por %p105, %p106
      %p108 = scmp.ne.s32.totalorder %s97, %s100
      %p109 = scmp.eq.s32.totalorder %s22, 1
      %p110 = por %p108, %p109
      %p111 = scmp.ne.s32.totalorder %s100, %s101
      %p112 = scmp.eq.s32.totalorder %s22, 0
      %p113 = por %p111, %p112
      %p114 = scmp.ne.s32.totalorder %s100, %s101
      %p115 = scmp.eq.s32.totalorder %s23, 1
      %p116 = por %p114, %p115
      %p118 = scmp.ne.s32.totalorder %s101, %s117
      %p119 = scmp.eq.s32.totalorder %s23, 0
      %p120 = por %p118, %p119
      %p121 = scmp.le.s32.totalorder 1, %s17
      %p122 = scmp.lt.s32.totalorder %s17, 3
      %p123 = pnand %p121, %p122
      %p124 = pneg %p123
      // Predicated region
      $region9: #{tpu_custom_call.1} parent=5 // pred_check
        _
      $region10: #{tpu_custom_call.1} parent=5 // pred_check_branch
        %126 = sbr.rel (%p123) target = $region12
      $region11: #{tpu_custom_call.1} parent=5 // pred_region
        %s127 = ssub.s32 %s17, 1
      $region12: #{tpu_custom_call.1} parent=5 // pred_fallthru
        _
      %p128 = scmp.lt.s32.totalorder %s17, 2
      // Predicated region
      $region13: #{tpu_custom_call.1} parent=5 // pred_check
        %p129 = pneg %p128
      $region14: #{tpu_custom_call.1} parent=5 // pred_check_branch
        %131 = sbr.rel (%p129) target = $region16
      $region15: #{tpu_custom_call.1} parent=5 // pred_region
        // Predicated region
        $region17: #{tpu_custom_call.1} parent=15 // pred_check
          %p132 = pneg %p51
        $region18: #{tpu_custom_call.1} parent=15 // pred_check_branch
          %134 = sbr.rel (%p132) target = $region20
        $region19: #{tpu_custom_call.1} parent=15 // pred_region
          %s135 = sand.u32 %s41, 1
          %s136 = scalar_lea.sflag [#allocation3], %s135
          %s137 = sand.u32 %s41, 1
          %s138 = smul.addr %s137, 32
          %s139 = scalar_lea.vmem [#allocation2], %s138
          %s140 = smul.u32 4, %s24
          %s142 = ssub.s32 512, 512
          %143 = vsyncadd %s136, %s142
          %s144 = sadd.s32 %s25, %s140
          %s145 = smul.addr %s144, 128
          %s146 = scalar_lea.hbm %s0, %s145
          %s147 = sshll.u32 %s139, 4
          %s148 = int_to_ptr.vmem [resolvable:$true] %s147
          %153 = dma.hbm_to_vmem [thread:$0]  %s146, 512, %s148, %s136, 128, 128, 8
        $region20: #{tpu_custom_call.1} parent=15 // pred_fallthru
          _
        // Predicated region
        $region21: #{tpu_custom_call.1} parent=15 // pred_check
          %p154 = pneg %p79
        $region22: #{tpu_custom_call.1} parent=15 // pred_check_branch
          %156 = sbr.rel (%p154) target = $region24
        $region23: #{tpu_custom_call.1} parent=15 // pred_region
          %s157 = sand.u32 %s69, 1
          %s158 = scalar_lea.sflag [#allocation6], %s157
          %s159 = sand.u32 %s69, 1
          %s160 = smul.addr %s159, 32
          %s161 = scalar_lea.vmem [#allocation5], %s160
          %s162 = smul.u32 4, %s24
          %s164 = ssub.s32 512, 512
          %165 = vsyncadd %s158, %s164
          %s166 = sadd.s32 %s25, %s162
          %s167 = smul.addr %s166, 128
          %s168 = scalar_lea.hbm %s1, %s167
          %s169 = sshll.u32 %s161, 4
          %s170 = int_to_ptr.vmem [resolvable:$true] %s169
          %175 = dma.hbm_to_vmem [thread:$0]  %s168, 512, %s170, %s158, 128, 128, 8
        $region24: #{tpu_custom_call.1} parent=15 // pred_fallthru
          _
      $region16: #{tpu_custom_call.1} parent=5 // pred_fallthru
        _
      %p176 = scmp.le.s32.totalorder 1, %s17
      %p177 = scmp.lt.s32.totalorder %s17, 3
      %p178 = pnand %p176, %p177
      %p179 = pneg %p178
      // Predicated region
      $region25: #{tpu_custom_call.1} parent=5 // pred_check
        _
      $region26: #{tpu_custom_call.1} parent=5 // pred_check_branch
        %181 = sbr.rel (%p178) target = $region28
      $region27: #{tpu_custom_call.1} parent=5 // pred_region
        %s182 = ssub.s32 %s17, 1
        %s183 = sand.u32 %s44, 1
        %s184 = scalar_lea.sflag [#allocation3], %s183
        %s185 = sand.u32 %s44, 1
        %s186 = smul.addr %s185, 32
        %s187 = scalar_lea.vmem [#allocation2], %s186
        // Predicated region
        $region29: #{tpu_custom_call.1} parent=27 // pred_check
          %p188 = pneg %p57
        $region30: #{tpu_custom_call.1} parent=27 // pred_check_branch
          %190 = sbr.rel (%p188) target = $region32
        $region31: #{tpu_custom_call.1} parent=27 // pred_region
          %191 = dma.done %s184, 512
        $region32: #{tpu_custom_call.1} parent=27 // pred_fallthru
          _
        %s192 = sand.u32 %s72, 1
        %s193 = scalar_lea.sflag [#allocation6], %s192
        %s194 = sand.u32 %s72, 1
        %s195 = smul.addr %s194, 32
        %s196 = scalar_lea.vmem [#allocation5], %s195
        // Predicated region
        $region33: #{tpu_custom_call.1} parent=27 // pred_check
          %p197 = pneg %p85
        $region34: #{tpu_custom_call.1} parent=27 // pred_check_branch
          %199 = sbr.rel (%p197) target = $region36
        $region35: #{tpu_custom_call.1} parent=27 // pred_region
          %200 = dma.done %s193, 512
        $region36: #{tpu_custom_call.1} parent=27 // pred_fallthru
          _
        %s201 = sand.u32 %s44, 1
        %s202 = scalar_lea.sflag [#allocation3], %s201
        %s203 = sand.u32 %s44, 1
        %s204 = smul.addr %s203, 32
        %s205 = scalar_lea.vmem [#allocation2], %s204
        %p206 = pneg %p57
        %p207 = pneg %p54
        %s208 = sand.u32 %s72, 1
        %s209 = scalar_lea.sflag [#allocation6], %s208
        %s210 = sand.u32 %s72, 1
        %s211 = smul.addr %s210, 32
        %s212 = scalar_lea.vmem [#allocation5], %s211
        %p213 = pneg %p85
        %p214 = pneg %p82
        %p215 = pneg %p113
        %p216 = pneg %p110
        %s217 = sand.u32 %s100, 1
        %s218 = scalar_lea.sflag [#allocation4], %s217
        %s219 = sand.u32 %s100, 1
        %s220 = smul.addr %s219, 8
        %s221 = scalar_lea.vmem [#allocation7], %s220
        %s222 = smul.u32 4, %s26
        %s223 = smul.u32 4, %s26
        %v224 = vld [vmem:[%s187] sm:$0xff]
        %v225 = vld [vmem:[%s187 + $0x8] sm:$0xff]
        %v226 = vld [vmem:[%s187 + $0x10] sm:$0xff]
        %v227 = vld [vmem:[%s187 + $0x18] sm:$0xff]
        %v228 = vld [vmem:[%s196] sm:$0xff]
        %v229 = vld [vmem:[%s196 + $0x8] sm:$0xff]
        %v230 = vld [vmem:[%s196 + $0x10] sm:$0xff]
        %v231 = vld [vmem:[%s196 + $0x18] sm:$0xff]
        %v232 = vmax.f32 %v224, 1e-10
        %v233 = vmax.f32 %v225, 1e-10
        %v234 = vmax.f32 %v226, 1e-10
        %v235 = vmax.f32 %v227, 1e-10
        %v236 = vlog2.pop %v232
        %v237 = vmul.f32 %v236, 0.6931472
        %v238 = vlog2.pop %v233
        %v239 = vmul.f32 %v238, 0.6931472
        %v240 = vlog2.pop %v234
        %v241 = vmul.f32 %v240, 0.6931472
        %v242 = vlog2.pop %v235
        %v243 = vmul.f32 %v242, 0.6931472
        %v244 = vmul.f32 %v228, %v237
        %v245 = vmul.f32 %v229, %v239
        %v246 = vmul.f32 %v230, %v241
        %v247 = vmul.f32 %v231, %v243
        %v248 = vsub.f32 1.0, %v228
        %v249 = vsub.f32 1.0, %v229
        %v250 = vsub.f32 1.0, %v230
        %v251 = vsub.f32 1.0, %v231
        %v252 = vsub.f32 1.0, %v224
        %v253 = vsub.f32 1.0, %v225
        %v254 = vsub.f32 1.0, %v226
        %v255 = vsub.f32 1.0, %v227
        %v256 = vmax.f32 %v252, 1e-10
        %v257 = vmax.f32 %v253, 1e-10
        %v258 = vmax.f32 %v254, 1e-10
        %v259 = vmax.f32 %v255, 1e-10
        %v260 = vlog2.pop %v256
        %v261 = vmul.f32 %v260, 0.6931472
        %v262 = vlog2.pop %v257
        %v263 = vmul.f32 %v262, 0.6931472
        %v264 = vlog2.pop %v258
        %v265 = vmul.f32 %v264, 0.6931472
        %v266 = vlog2.pop %v259
        %v267 = vmul.f32 %v266, 0.6931472
        %v268 = vmul.f32 %v248, %v261
        %v269 = vmul.f32 %v249, %v263
        %v270 = vmul.f32 %v250, %v265
        %v271 = vmul.f32 %v251, %v267
        %v272 = vadd.f32 %v244, %v268
        %v273 = vadd.f32 %v245, %v269
        %v274 = vadd.f32 %v246, %v270
        %v275 = vadd.f32 %v247, %v271
        %v276 = vadd.f32 %v272, %v273
        %v277 = vadd.f32 %v276, %v274
        %v278 = vadd.f32 %v277, %v275
        %279 = vst [vmem:[%s221] sm:$0xff] %v278
        %s280 = sand.u32 %s100, 1
        %s281 = scalar_lea.sflag [#allocation4], %s280
        %s282 = sand.u32 %s100, 1
        %s283 = smul.addr %s282, 8
        %s284 = scalar_lea.vmem [#allocation7], %s283
        // Predicated region
        $region37: #{tpu_custom_call.1} parent=27 // pred_check
          %p285 = pneg %p110
        $region38: #{tpu_custom_call.1} parent=27 // pred_check_branch
          %287 = sbr.rel (%p285) target = $region40
        $region39: #{tpu_custom_call.1} parent=27 // pred_region
          %s289 = ssub.s32 128, 128
          %290 = vsyncadd %s281, %s289
          %s291 = sadd.s32 %s27, %s26
          %s292 = smul.addr %s291, 128
          %s293 = scalar_lea.hbm %s2, %s292
          %s295 = sshll.u32 %s284, 4
          %s296 = int_to_ptr.vmem [resolvable:$true] %s295
          %298 = dma.vmem_to_hbm [thread:$0]  %s296, 128, %s293, %s281
        $region40: #{tpu_custom_call.1} parent=27 // pred_fallthru
          _
      $region28: #{tpu_custom_call.1} parent=5 // pred_fallthru
        _
      %p299 = scmp.le.s32.totalorder 2, %s17
      // Predicated region
      $region41: #{tpu_custom_call.1} parent=5 // pred_check
        %p300 = pneg %p299
      $region42: #{tpu_custom_call.1} parent=5 // pred_check_branch
        %302 = sbr.rel (%p300) target = $region44
      $region43: #{tpu_custom_call.1} parent=5 // pred_region
        %s303 = ssub.s32 %s17, 2
        // Predicated region
        $region45: #{tpu_custom_call.1} parent=43 // pred_check
          %p304 = pneg %p116
        $region46: #{tpu_custom_call.1} parent=43 // pred_check_branch
          %306 = sbr.rel (%p304) target = $region48
        $region47: #{tpu_custom_call.1} parent=43 // pred_region
          %s307 = sand.u32 %s101, 1
          %s308 = scalar_lea.sflag [#allocation4], %s307
          %s309 = sand.u32 %s101, 1
          %s310 = smul.addr %s309, 8
          %s311 = scalar_lea.vmem [#allocation7], %s310
          %312 = dma.done %s308, 128
        $region48: #{tpu_custom_call.1} parent=43 // pred_fallthru
          _
      $region44: #{tpu_custom_call.1} parent=5 // pred_fallthru
        _
    $region6: #{tpu_custom_call.1} parent=1 // loop_footer
      %s21 = sadd.s32 1, %s17
    $region7: #{tpu_custom_call.1} parent=1 // loop_footer_branch
      %16 = sbr.rel target = $region3
    $region8: #{tpu_custom_call.1} parent=1 // loop_exit
      _
    %313 = vsyncpa [#allocation3], 1
    %s314 = scalar_lea.sflag [#allocation3], 1
    %315 = vsyncpa %s314, 1
    %316 = vsyncpa [#allocation6], 1
    %s317 = scalar_lea.sflag [#allocation6], 1
    %318 = vsyncpa %s317, 1
    %319 = vsyncpa [#allocation4], 1
    %s320 = scalar_lea.sflag [#allocation4], 1
    %321 = vsyncpa %s320, 1

</llo_original>
